<compile_context>
chip_gen: v5e
topology: v5e:2x2
jax: 0.10.0
libtpu: 0.0.40
codegen_flags: <defaults>
</compile_context>

<pallas_src>
import math

import jax
import jax.numpy as jnp
from jax.experimental import pallas as pl
from jax.experimental.pallas import tpu as pltpu


def _round_up(x: int, m: int) -> int:
    return (x + m - 1) // m * m


# ---------------------------------------------------------------------------
# Kernels
# ---------------------------------------------------------------------------

def _mlp_kernel_resident(x_ref, w1_ref, w2_ref, o_ref):
    # Weights fully resident in VMEM: single pass over the hidden dim,
    # no accumulator scratch needed.
    #   x_ref:  (tm, dim)   bf16
    #   w1_ref: (dim, hdim) bf16   (= W_fc^T)
    #   w2_ref: (hdim, dim) bf16   (= W_proj^T)
    h = jnp.dot(x_ref[...], w1_ref[...], preferred_element_type=jnp.float32)
    h = jnp.maximum(h, 0.0)
    h = h * h                                        # relu(.)**2 in f32 on the VPU
    o_ref[...] = jnp.dot(h.astype(w2_ref.dtype), w2_ref[...],
                         preferred_element_type=jnp.float32).astype(o_ref.dtype)


def _mlp_kernel_tiled(x_ref, w1_ref, w2_ref, o_ref, acc_ref):
    # Hidden dimension tiled by grid axis k with an f32 VMEM accumulator.
    #   x_ref:  (tm, dim)  bf16
    #   w1_ref: (dim, tk)  bf16 slab of W_fc^T
    #   w2_ref: (tk, dim)  bf16 slab of W_proj^T
    #   acc_ref:(tm, dim)  f32, resident across the k axis
    k = pl.program_id(1)

    @pl.when(k == 0)
    def _():
        acc_ref[...] = jnp.zeros_like(acc_ref)

    h = jnp.dot(x_ref[...], w1_ref[...], preferred_element_type=jnp.float32)
    h = jnp.maximum(h, 0.0)
    h = h * h
    acc_ref[...] += jnp.dot(h.astype(w2_ref.dtype), w2_ref[...],
                            preferred_element_type=jnp.float32)

    @pl.when(k == pl.num_programs(1) - 1)
    def _():
        o_ref[...] = acc_ref[...].astype(o_ref.dtype)


# ---------------------------------------------------------------------------
# One-time weight preparation (NOT per forward call)
# ---------------------------------------------------------------------------

def prepare_mlp_weights(w_fc, w_proj, dtype=jnp.bfloat16):
    """Convert PyTorch-layout weights into kernel layout, once.

    w_fc:   (hdim, dim)  nn.Linear (out_features, in_features)
    w_proj: (dim, hdim)

    Returns (w1, w2) = (W_fc^T as (dim, hdim), W_proj^T as (hdim, dim)) in bf16.
    Call this at init / after each optimizer step, not inside the forward.
    """
    w1 = jnp.asarray(w_fc, dtype=dtype).T
    w2 = jnp.asarray(w_proj, dtype=dtype).T
    return w1, w2


def init_mlp_params(key, dim, dtype=jnp.float32):
    """Deterministic init matching CastedLinear.reset_parameters / MLP.__init__."""
    hdim = 4 * dim
    std = 0.5 * dim ** (-0.5)
    bound = (3.0 ** 0.5) * std
    w_fc = jax.random.uniform(key, (hdim, dim), dtype=dtype,
                              minval=-bound, maxval=bound)
    w_proj = jnp.zeros((dim, hdim), dtype=dtype)     # c_proj.weight zeroed in __init__
    return w_fc, w_proj


# ---------------------------------------------------------------------------
# Tile / VMEM budgeting
# ---------------------------------------------------------------------------

def _vmem_budget_bytes() -> int:
    default_cap = 64 * 1024 * 1024                    # conservative (v7x per-TC)
    try:
        cap = int(getattr(pltpu.get_tpu_info(), "vmem_capacity_bytes", default_cap))
    except Exception:
        cap = default_cap
    return (cap * 3) // 4                             # headroom for compiler temps


def _pick_tm(n: int, tm_req: int) -> int:
    """MXU-friendly token tile: multiple of 128 for large n, 8-granule for tiny n."""
    tm_req = max(128, _round_up(tm_req, 128))
    if n <= 128:
        return max(8, _round_up(n, 8))
    tm = min(tm_req, _round_up(n, 128))
    # v7x has two TensorCores: prefer >=2 token tiles when padding cost is small.
    if (n + tm - 1) // tm == 1:
        half = _round_up((n + 1) // 2, 128)
        if 2 * half - n <= n // 8:
            tm = half
    return tm


def _pick_tk(dim: int, hdim: int, tm: int, budget: int, out_itemsize: int) -> int:
    """Largest hidden tile whose double-buffered working set fits the VMEM budget."""

    def working_set(tk, resident):
        wslabs = 2 * 2 * (2 * dim * tk)               # 2 weight slabs, 2 buffers, bf16
        xio = 2 * tm * dim * 2 + 2 * tm * dim * out_itemsize
        acc = 0 if resident else tm * dim * 4
        htmp = tm * tk * 4                            # f32 intermediate
        return wslabs + xio + acc + htmp

    # Fully weight-resident (single k step): weights DMA'd once for the call.
    if working_set(hdim, True) <= budget:
        return hdim
    cands = sorted({c for c in (4096, 2048, 1024, 512, 256, 128)
                    if c <= hdim and hdim % c == 0}, reverse=True)
    for c in cands:
        if working_set(c, False) <= budget:
            return c
    return cands[-1] if cands else hdim


# ---------------------------------------------------------------------------
# Forward wrapper
# ---------------------------------------------------------------------------

def mlp_forward(x, w1, w2, *, tm=512, tk=None, out_dtype=None, interpret=False):
    """Fused MLP forward:  relu(x @ w1)**2 @ w2.

    x:  (..., dim) activations. bf16 is the zero-copy fast path.
    w1: (dim, hdim) bf16 — pre-transposed c_fc.weight   (prepare_mlp_weights)
    w2: (hdim, dim) bf16 — pre-transposed c_proj.weight (prepare_mlp_weights)
    """
    *lead, dim = x.shape
    dim1, hdim = w1.shape
    assert dim1 == dim and w2.shape == (hdim, dim)
    assert dim % 128 == 0, "feature dim must be a multiple of 128 (lane width)"
    assert hdim % 128 == 0

    out_dtype = out_dtype or x.dtype
    out_itemsize = jnp.dtype(out_dtype).itemsize

    n = math.prod(lead) if lead else 1
    budget = _vmem_budget_bytes()

    tm = _pick_tm(n, tm)
    n_pad = _round_up(n, tm)
    if tk is None:
        tk = _pick_tk(dim, hdim, tm, budget, out_itemsize)
    assert hdim % tk == 0, "hidden tile tk must divide hdim"

    # Activations: bf16 in avoids any wrapper-side cast; other dtypes cast once.
    x2d = x.reshape(n, dim)
    if x2d.dtype != jnp.bfloat16:
        x2d = x2d.astype(jnp.bfloat16)
    # Weights should already be bf16 (prepare_mlp_weights); cast defensively.
    if w1.dtype != jnp.bfloat16:
        w1 = w1.astype(jnp.bfloat16)
    if w2.dtype != jnp.bfloat16:
        w2 = w2.astype(jnp.bfloat16)
    if n_pad != n:
        x2d = jnp.pad(x2d, ((0, n_pad - n), (0, 0)))

    n_tiles = n_pad // tm
    resident = (tk == hdim)

    weight_bytes = 2 * dim * hdim * 2                 # both weights, bf16
    cost = pl.CostEstimate(
        flops=4 * n_pad * dim * hdim,                 # two matmuls
        transcendentals=0,
        bytes_accessed=(n_pad * dim * 2               # x read (bf16)
                        + n_pad * dim * out_itemsize  # y written
                        # weights are re-streamed once per token tile unless
                        # fully resident (constant block index -> DMA'd once):
                        + weight_bytes * (1 if resident else n_tiles)),
    )
    compiler_params = pltpu.CompilerParams(
        dimension_semantics=("parallel",) if resident else ("parallel", "arbitrary"),
        vmem_limit_bytes=budget,
    )

    if resident:
        grid_spec = pltpu.PrefetchScalarGridSpec(
            num_scalar_prefetch=0,
            grid=(n_tiles,),
            in_specs=[
                pl.BlockSpec((tm, dim), lambda i: (i, 0)),     # token tile
                pl.BlockSpec((dim, hdim), lambda i: (0, 0)),   # W_fc^T (resident)
                pl.BlockSpec((hdim, dim), lambda i: (0, 0)),   # W_proj^T (resident)
            ],
            out_specs=pl.BlockSpec((tm, dim), lambda i: (i, 0)),
        )
        kernel = _mlp_kernel_resident
    else:
        grid_spec = pltpu.PrefetchScalarGridSpec(
            num_scalar_prefetch=0,
            grid=(n_tiles, hdim // tk),
            in_specs=[
                pl.BlockSpec((tm, dim), lambda i, k: (i, 0)),  # token tile
                pl.BlockSpec((dim, tk), lambda i, k: (0, k)),  # W_fc^T slab
                pl.BlockSpec((tk, dim), lambda i, k: (k, 0)),  # W_proj^T slab
            ],
            out_specs=pl.BlockSpec((tm, dim), lambda i, k: (i, 0)),
            scratch_shapes=[pltpu.VMEM((tm, dim), jnp.float32)],
        )
        kernel = _mlp_kernel_tiled

    out = pl.pallas_call(
        kernel,
        out_shape=jax.ShapeDtypeStruct((n_pad, dim), out_dtype),
        grid_spec=grid_spec,
        compiler_params=compiler_params,
        cost_estimate=cost,
        interpret=interpret,
    )(x2d, w1, w2)

    if n_pad != n:
        out = out[:n]
    return out.reshape(*lead, dim)


# ---------------------------------------------------------------------------
# Reference + tests
# ---------------------------------------------------------------------------

def _reference(x, w_fc, w_proj):
    """Plain-JAX reference, PyTorch layout, same numerics (bf16 ops, f32 accum)."""
    xb = x.astype(jnp.bfloat16)
    w1 = w_fc.astype(jnp.bfloat16)
    w2 = w_proj.astype(jnp.bfloat16)
    h = jnp.dot(xb, w1.T, preferred_element_type=jnp.float32)
    h = jnp.maximum(h, 0.0)
    h = h * h
    y = jnp.dot(h.astype(jnp.bfloat16), w2.T, preferred_element_type=jnp.float32)
    return y.astype(x.dtype)


if __name__ == "__main__":
    key = jax.random.PRNGKey(0)
    k_x1, k_x2, k_fc, k_pj = jax.random.split(key, 4)

    dim, hdim = 128, 512                              # small GPT-ish widths (hdim = 4*dim)

    # PyTorch-layout params, then ONE-TIME kernel-layout prep (bf16 + transpose).
    w_fc, w_proj_zero = init_mlp_params(k_fc, dim)
    bound_pj = (3.0 ** 0.5) * 0.5 * hdim ** (-0.5)
    w_proj = jax.random.uniform(k_pj, (dim, hdim), dtype=jnp.float32,
                                minval=-bound_pj, maxval=bound_pj)
    w1, w2_zero = prepare_mlp_weights(w_fc, w_proj_zero)
    _, w2 = prepare_mlp_weights(w_fc, w_proj)

    # --- Test 1: tiny token count, zero-init c_proj (module init) -> exact zeros ---
    B, T = 2, 8
    x = jax.random.normal(k_x1, (B, T, dim), dtype=jnp.float32)
    y0 = jax.block_until_ready(mlp_forward(x, w1, w2_zero))
    assert y0.shape == (B, T, dim) and y0.dtype == x.dtype
    assert jnp.allclose(y0, 0.0)

    # --- Test 2: weight-resident path (auto tk == hdim) vs reference ---
    y1 = jax.block_until_ready(mlp_forward(x, w1, w2))
    y1_ref = _reference(x, w_fc, w_proj)
    assert jnp.allclose(y1, y1_ref, atol=1e-2, rtol=1e-2)

    # --- Test 3: bf16 zero-copy activations + tiled k-axis accumulator (tk < hdim) ---
    B2, T2 = 4, 64                                    # n = 256 tokens -> 2 token tiles
    x2 = jax.random.normal(k_x2, (B2, T2, dim), dtype=jnp.float32).astype(jnp.bfloat16)
    y2 = jax.block_until_ready(mlp_forward(x2, w1, w2, tm=128, tk=256))
    y2_ref = _reference(x2, w_fc, w_proj)
    assert y2.shape == (B2, T2, dim) and y2.dtype == jnp.bfloat16
    assert jnp.allclose(y2.astype(jnp.float32), y2_ref.astype(jnp.float32),
                        atol=3e-2, rtol=3e-2)

    # --- Test 4: default auto tiling (resident weights, 2 parallel token tiles) ---
    y3 = jax.block_until_ready(mlp_forward(x2, w1, w2))
    assert jnp.allclose(y3.astype(jnp.float32), y2_ref.astype(jnp.float32),
                        atol=3e-2, rtol=3e-2)

    print("KERNEL_OK")
</pallas_src>

<mosaic_0001>
module attributes {stable_mosaic.version = 11 : i64} {
  func.func @_mlp_kernel_resident(%arg0: i32, %arg1: memref<16x128xbf16, #tpu.memory_space<vmem>>, %arg2: memref<128x512xbf16, #tpu.memory_space<vmem>>, %arg3: memref<512x128xbf16, #tpu.memory_space<vmem>>, %arg4: memref<16x128xf32, #tpu.memory_space<vmem>>) attributes {dimension_semantics = [#tpu.dimension_semantics<parallel>], iteration_bounds = array<i64: 1>, scalar_prefetch = 0 : i64, scratch_operands = 0 : i64, tpu.core_type = #tpu.core_type<tc>, window_params = [{transform_indices = @transform_0, window_bounds = array<i64: 16, 128>}, {pipeline_mode = #tpu.pipeline_mode<synchronous>, transform_indices = @transform_1, window_bounds = array<i64: 128, 512>}, {pipeline_mode = #tpu.pipeline_mode<synchronous>, transform_indices = @transform_2, window_bounds = array<i64: 512, 128>}, {transform_indices = @transform_3, window_bounds = array<i64: 16, 128>}]} {
    %c0 = arith.constant 0 : index
    %c0_0 = arith.constant 0 : index
    %0 = vector.load %arg1[%c0, %c0_0] : memref<16x128xbf16, #tpu.memory_space<vmem>>, vector<16x128xbf16>
    %c0_1 = arith.constant 0 : index
    %c0_2 = arith.constant 0 : index
    %1 = vector.load %arg2[%c0_1, %c0_2] : memref<128x512xbf16, #tpu.memory_space<vmem>>, vector<128x512xbf16>
    %cst = arith.constant dense<0.000000e+00> : vector<16x512xf32>
    %2 = tpu.matmul %0, %1, %cst {dimension_numbers = #tpu.dot_dimension_numbers<[1], [0], [0], [1], [0, 0, 1, 1], [], []>} : vector<16x128xbf16>, vector<128x512xbf16>, vector<16x512xf32> -> vector<16x512xf32>
    %cst_3 = arith.constant 0.000000e+00 : f32
    %3 = vector.broadcast %cst_3 : f32 to vector<16x512xf32>
    %4 = arith.maximumf %2, %3 : vector<16x512xf32>
    %5 = arith.mulf %4, %4 : vector<16x512xf32>
    %6 = arith.truncf %5 : vector<16x512xf32> to vector<16x512xbf16>
    %c0_4 = arith.constant 0 : index
    %c0_5 = arith.constant 0 : index
    %7 = vector.load %arg3[%c0_4, %c0_5] : memref<512x128xbf16, #tpu.memory_space<vmem>>, vector<512x128xbf16>
    %cst_6 = arith.constant dense<0.000000e+00> : vector<16x128xf32>
    %8 = tpu.matmul %6, %7, %cst_6 {dimension_numbers = #tpu.dot_dimension_numbers<[1], [0], [0], [1], [0, 0, 1, 1], [], []>} : vector<16x512xbf16>, vector<512x128xbf16>, vector<16x128xf32> -> vector<16x128xf32>
    %c0_7 = arith.constant 0 : index
    %c0_8 = arith.constant 0 : index
    %9 = vector.load %arg4[%c0_7, %c0_8] : memref<16x128xf32, #tpu.memory_space<vmem>>, vector<16x128xf32>
    tpu.vector_store %arg4[%c0_7, %c0_8], %8 {strides = array<i32>} : memref<16x128xf32, #tpu.memory_space<vmem>>, vector<16x128xf32>,
    return
  }
  func.func @transform_0(%arg0: i32) -> (i32, i32) {
    %c0_i32 = arith.constant 0 : i32
    %c0_i32_0 = arith.constant 0 : i32
    return %arg0, %c0_i32 : i32, i32
  }
  func.func @transform_1(%arg0: i32) -> (i32, i32) {
    %c0_i32 = arith.constant 0 : i32
    %c0_i32_0 = arith.constant 0 : i32
    %c0_i32_1 = arith.constant 0 : i32
    return %c0_i32, %c0_i32_0 : i32, i32
  }
  func.func @transform_2(%arg0: i32) -> (i32, i32) {
    %c0_i32 = arith.constant 0 : i32
    %c0_i32_0 = arith.constant 0 : i32
    %c0_i32_1 = arith.constant 0 : i32
    return %c0_i32, %c0_i32_0 : i32, i32
  }
  func.func @transform_3(%arg0: i32) -> (i32, i32) {
    %c0_i32 = arith.constant 0 : i32
    %c0_i32_0 = arith.constant 0 : i32
    return %arg0, %c0_i32 : i32, i32
  }
}

</mosaic_0001>

<llo_original>
// kernel: tpu_custom_call.1
$region0: #{tpu_custom_call.1}
  #allocation0 [shape = 'u32[]', space=smem, size = 0x4, offset = 0x4, fixed_abs, tag = 'smem constant byte address 0x4 - core index']
  #allocation1 [shape = 'u32[72,128]{1,0:T(1,128)}', space=vmem, size = 0x9000, scoped, tag = 'internal scratch']
  %s0 = inlined_call_operand.hbm [shape: bf16[16,128], index: 0, kind: input, shape index: {}]
  %s1 = inlined_call_operand.hbm [shape: bf16[128,512], index: 1, kind: input, shape index: {}]
  %s2 = inlined_call_operand.hbm [shape: bf16[512,128], index: 2, kind: input, shape index: {}]
  %s3 = inlined_call_operand.hbm [shape: f32[16,128], index: 3, kind: output, shape index: {}]
  %s4 = sld [smem:[#allocation0]]
  $region34: #{tpu_custom_call.1} parent=0
    _
  %s6 = ssub.s32 1, %s4
  %s7 = scalar_select 0, %s6, %s4
  $region1: #{tpu_custom_call.1} parent=0
    #allocation2 [shape = 'u8[4096]{0}', space=vmem, size = 0x1000, scoped, tag = 'input window, operand 0, single buffered']
    #allocation3 [shape = 's32[1]{0}', space=sflag, size = 0x4, scoped, tag = 'scoped memory for tpu_custom_call.1']
    #allocation4 [shape = 's32[1]{0}', space=sflag, size = 0x4, scoped, tag = 'scoped memory for tpu_custom_call.1']
    #allocation5 [shape = 'u8[131072]{0}', space=vmem, size = 0x20000, scoped, tag = 'input window, operand 1, single buffered']
    #allocation6 [shape = 's32[1]{0}', space=sflag, size = 0x4, scoped, tag = 'scoped memory for tpu_custom_call.1']
    #allocation7 [shape = 'u8[131072]{0}', space=vmem, size = 0x20000, scoped, tag = 'input window, operand 2, single buffered']
    #allocation8 [shape = 'u8[8192]{0}', space=vmem, size = 0x2000, scoped, tag = 'output window, operand 0, single buffered']
    %8 = vsyncpa [#allocation3], 0
    %9 = vsyncpa [#allocation6], 0
    %10 = vsyncpa [#allocation4], 0
    // Predicated region
    $region2: #{tpu_custom_call.1} parent=1 // pred_check
      _
    $region3: #{tpu_custom_call.1} parent=1 // pred_check_branch
      %12 = sbr.rel (0) target = $region5
    $region4: #{tpu_custom_call.1} parent=1 // pred_region
      %14 = vsyncadd [#allocation3], 0
      %s15 = sshll.u32 %s0, 4
      %s16 = int_to_ptr.hbm [resolvable:$true] %s15
      %s17 = sshll.u32 [#allocation2], 4
      %s18 = int_to_ptr.vmem [resolvable:$true] %s17
      %23 = dma.hbm_to_vmem [thread:$0]  %s16, 128, %s18, [#allocation3], 64, 64, 4
    $region5: #{tpu_custom_call.1} parent=1 // pred_fallthru
      _
    // Predicated region
    $region6: #{tpu_custom_call.1} parent=1 // pred_check
      _
    $region7: #{tpu_custom_call.1} parent=1 // pred_check_branch
      %25 = sbr.rel (0) target = $region9
    $region8: #{tpu_custom_call.1} parent=1 // pred_region
      %27 = vsyncadd [#allocation6], 0
      %s28 = sshll.u32 %s1, 4
      %s29 = int_to_ptr.hbm [resolvable:$true] %s28
      %s30 = sshll.u32 [#allocation5], 4
      %s31 = int_to_ptr.vmem [resolvable:$true] %s30
      %36 = dma.hbm_to_vmem [thread:$0]  %s29, 4096, %s31, [#allocation6], 256, 256, 16
    $region9: #{tpu_custom_call.1} parent=1 // pred_fallthru
      _
    // Predicated region
    $region10: #{tpu_custom_call.1} parent=1 // pred_check
      _
    $region11: #{tpu_custom_call.1} parent=1 // pred_check_branch
      %38 = sbr.rel (0) target = $region13
    $region12: #{tpu_custom_call.1} parent=1 // pred_region
      %40 = vsyncadd [#allocation6], 0
      %s41 = sshll.u32 %s2, 4
      %s42 = int_to_ptr.hbm [resolvable:$true] %s41
      %s43 = sshll.u32 [#allocation7], 4
      %s44 = int_to_ptr.vmem [resolvable:$true] %s43
      %49 = dma.hbm_to_vmem [thread:$0]  %s42, 4096, %s44, [#allocation6], 64, 64, 4
    $region13: #{tpu_custom_call.1} parent=1 // pred_fallthru
      _
    // Predicated region
    $region14: #{tpu_custom_call.1} parent=1 // pred_check
      _
    $region15: #{tpu_custom_call.1} parent=1 // pred_check_branch
      %51 = sbr.rel (0) target = $region17
    $region16: #{tpu_custom_call.1} parent=1 // pred_region
      %53 = dma.done [#allocation3], 128
    $region17: #{tpu_custom_call.1} parent=1 // pred_fallthru
      _
    // Predicated region
    $region18: #{tpu_custom_call.1} parent=1 // pred_check
      _
    $region19: #{tpu_custom_call.1} parent=1 // pred_check_branch
      %55 = sbr.rel (0) target = $region21
    $region20: #{tpu_custom_call.1} parent=1 // pred_region
      %57 = dma.done [#allocation6], 4096
    $region21: #{tpu_custom_call.1} parent=1 // pred_fallthru
      _
    // Predicated region
    $region22: #{tpu_custom_call.1} parent=1 // pred_check
      _
    $region23: #{tpu_custom_call.1} parent=1 // pred_check_branch
      %59 = sbr.rel (0) target = $region25
    $region24: #{tpu_custom_call.1} parent=1 // pred_region
      %61 = dma.done [#allocation6], 4096
    $region25: #{tpu_custom_call.1} parent=1 // pred_fallthru
      _
    %v62 = vld [vmem:[#allocation2] sm:$0xf]
    %v63 = vld [vmem:[#allocation2 + $0x4] sm:$0xf]
    %v64 = vld [vmem:[#allocation5] sm:$0xff]
    %v65 = vld [vmem:[#allocation5 + $0x8] sm:$0xff]
    %v66 = vld [vmem:[#allocation5 + $0x10] sm:$0xff]
    %v67 = vld [vmem:[#allocation5 + $0x18] sm:$0xff]
    %v68 = vld [vmem:[#allocation5 + $0x20] sm:$0xff]
    %v69 = vld [vmem:[#allocation5 + $0x28] sm:$0xff]
    %v70 = vld [vmem:[#allocation5 + $0x30] sm:$0xff]
    %v71 = vld [vmem:[#allocation5 + $0x38] sm:$0xff]
    %v72 = vld [vmem:[#allocation5 + $0x40] sm:$0xff]
    %v73 = vld [vmem:[#allocation5 + $0x48] sm:$0xff]
    %v74 = vld [vmem:[#allocation5 + $0x50] sm:$0xff]
    %v75 = vld [vmem:[#allocation5 + $0x58] sm:$0xff]
    %v76 = vld [vmem:[#allocation5 + $0x60] sm:$0xff]
    %v77 = vld [vmem:[#allocation5 + $0x68] sm:$0xff]
    %v78 = vld [vmem:[#allocation5 + $0x70] sm:$0xff]
    %v79 = vld [vmem:[#allocation5 + $0x78] sm:$0xff]
    %v80 = vld [vmem:[#allocation5 + $0x80] sm:$0xff]
    %v81 = vld [vmem:[#allocation5 + $0x88] sm:$0xff]
    %v82 = vld [vmem:[#allocation5 + $0x90] sm:$0xff]
    %v83 = vld [vmem:[#allocation5 + $0x98] sm:$0xff]
    %v84 = vld [vmem:[#allocation5 + $0xa0] sm:$0xff]
    %v85 = vld [vmem:[#allocation5 + $0xa8] sm:$0xff]
    %v86 = vld [vmem:[#allocation5 + $0xb0] sm:$0xff]
    %v87 = vld [vmem:[#allocation5 + $0xb8] sm:$0xff]
    %v88 = vld [vmem:[#allocation5 + $0xc0] sm:$0xff]
    %v89 = vld [vmem:[#allocation5 + $0xc8] sm:$0xff]
    %v90 = vld [vmem:[#allocation5 + $0xd0] sm:$0xff]
    %v91 = vld [vmem:[#allocation5 + $0xd8] sm:$0xff]
    %v92 = vld [vmem:[#allocation5 + $0xe0] sm:$0xff]
    %v93 = vld [vmem:[#allocation5 + $0xe8] sm:$0xff]
    %v94 = vld [vmem:[#allocation5 + $0xf0] sm:$0xff]
    %v95 = vld [vmem:[#allocation5 + $0xf8] sm:$0xff]
    %v98 = vunpack.c.l.b16 %v62
    %v99 = vunpack.c.l.b16 %v63
    %v100 = vpack.c.b16 %v99, %v98
    %v134 = vunpack.c.l.b16 %v64
    %v135 = vunpack.c.h.b16 %v64
    %v136 = vunpack.c.l.b16 %v65
    %v137 = vunpack.c.h.b16 %v65
    %v138 = vunpack.c.l.b16 %v66
    %v139 = vunpack.c.h.b16 %v66
    %v140 = vunpack.c.l.b16 %v67
    %v141 = vunpack.c.h.b16 %v67
    %v142 = vunpack.c.l.b16 %v68
    %v143 = vunpack.c.h.b16 %v68
    %v144 = vunpack.c.l.b16 %v69
    %v145 = vunpack.c.h.b16 %v69
    %v146 = vunpack.c.l.b16 %v70
    %v147 = vunpack.c.h.b16 %v70
    %v148 = vunpack.c.l.b16 %v71
    %v149 = vunpack.c.h.b16 %v71
    %v150 = vunpack.c.l.b16 %v72
    %v151 = vunpack.c.h.b16 %v72
    %v152 = vunpack.c.l.b16 %v73
    %v153 = vunpack.c.h.b16 %v73
    %v154 = vunpack.c.l.b16 %v74
    %v155 = vunpack.c.h.b16 %v74
    %v156 = vunpack.c.l.b16 %v75
    %v157 = vunpack.c.h.b16 %v75
    %v158 = vunpack.c.l.b16 %v76
    %v159 = vunpack.c.h.b16 %v76
    %v160 = vunpack.c.l.b16 %v77
    %v161 = vunpack.c.h.b16 %v77
    %v162 = vunpack.c.l.b16 %v78
    %v163 = vunpack.c.h.b16 %v78
    %v164 = vunpack.c.l.b16 %v79
    %v165 = vunpack.c.h.b16 %v79
    %v166 = vunpack.c.l.b16 %v80
    %v167 = vunpack.c.h.b16 %v80
    %v168 = vunpack.c.l.b16 %v81
    %v169 = vunpack.c.h.b16 %v81
    %v170 = vunpack.c.l.b16 %v82
    %v171 = vunpack.c.h.b16 %v82
    %v172 = vunpack.c.l.b16 %v83
    %v173 = vunpack.c.h.b16 %v83
    %v174 = vunpack.c.l.b16 %v84
    %v175 = vunpack.c.h.b16 %v84
    %v176 = vunpack.c.l.b16 %v85
    %v177 = vunpack.c.h.b16 %v85
    %v178 = vunpack.c.l.b16 %v86
    %v179 = vunpack.c.h.b16 %v86
    %v180 = vunpack.c.l.b16 %v87
    %v181 = vunpack.c.h.b16 %v87
    %v182 = vunpack.c.l.b16 %v88
    %v183 = vunpack.c.h.b16 %v88
    %v184 = vunpack.c.l.b16 %v89
    %v185 = vunpack.c.h.b16 %v89
    %v186 = vunpack.c.l.b16 %v90
    %v187 = vunpack.c.h.b16 %v90
    %v188 = vunpack.c.l.b16 %v91
    %v189 = vunpack.c.h.b16 %v91
    %v190 = vunpack.c.l.b16 %v92
    %v191 = vunpack.c.h.b16 %v92
    %v192 = vunpack.c.l.b16 %v93
    %v193 = vunpack.c.h.b16 %v93
    %v194 = vunpack.c.l.b16 %v94
    %v195 = vunpack.c.h.b16 %v94
    %v196 = vunpack.c.l.b16 %v95
    %v197 = vunpack.c.h.b16 %v95
    %v198 = vpack.c.b16 %v138, %v134
    %v199 = vpack.c.b16 %v139, %v135
    %v200 = vpack.c.b16 %v140, %v136
    %v201 = vpack.c.b16 %v141, %v137
    %v202 = vpack.c.b16 %v146, %v142
    %v203 = vpack.c.b16 %v147, %v143
    %v204 = vpack.c.b16 %v148, %v144
    %v205 = vpack.c.b16 %v149, %v145
    %v206 = vpack.c.b16 %v154, %v150
    %v207 = vpack.c.b16 %v155, %v151
    %v208 = vpack.c.b16 %v156, %v152
    %v209 = vpack.c.b16 %v157, %v153
    %v210 = vpack.c.b16 %v162, %v158
    %v211 = vpack.c.b16 %v163, %v159
    %v212 = vpack.c.b16 %v164, %v160
    %v213 = vpack.c.b16 %v165, %v161
    %v214 = vpack.c.b16 %v170, %v166
    %v215 = vpack.c.b16 %v171, %v167
    %v216 = vpack.c.b16 %v172, %v168
    %v217 = vpack.c.b16 %v173, %v169
    %v218 = vpack.c.b16 %v178, %v174
    %v219 = vpack.c.b16 %v179, %v175
    %v220 = vpack.c.b16 %v180, %v176
    %v221 = vpack.c.b16 %v181, %v177
    %v222 = vpack.c.b16 %v186, %v182
    %v223 = vpack.c.b16 %v187, %v183
    %v224 = vpack.c.b16 %v188, %v184
    %v225 = vpack.c.b16 %v189, %v185
    %v226 = vpack.c.b16 %v194, %v190
    %v227 = vpack.c.b16 %v195, %v191
    %v228 = vpack.c.b16 %v196, %v192
    %v229 = vpack.c.b16 %v197, %v193
    %262 = vmatpush.bf16.msra.mxu0 %v226
    %263 = vmatpush.bf16.msra.mxu0 %v222
    %264 = vmatpush.bf16.msra.mxu0 %v218
    %265 = vmatpush.bf16.msra.mxu0 %v214
    %266 = vmatpush.bf16.msra.mxu0 %v210
    %267 = vmatpush.bf16.msra.mxu0 %v206
    %268 = vmatpush.bf16.msra.mxu0 %v202
    %269 = vmatpush.bf16.msra.mxu0 %v198
    %270 = vmatmul.bf16.gmra.mxu0 %v100
    %v271 = vpop.f32.mrf.mxu0
    %v272 = vadd.f32 0.0, %v271
    %v273 = vpop.f32.mrf.mxu0
    %v274 = vadd.f32 0.0, %v273
    %275 = vdwg.mxu0
    %276 = vmatpush.bf16.msra.mxu0 %v227
    %277 = vmatpush.bf16.msra.mxu0 %v223
    %278 = vmatpush.bf16.msra.mxu0 %v219
    %279 = vmatpush.bf16.msra.mxu0 %v215
    %280 = vmatpush.bf16.msra.mxu0 %v211
    %281 = vmatpush.bf16.msra.mxu0 %v207
    %282 = vmatpush.bf16.msra.mxu0 %v203
    %283 = vmatpush.bf16.msra.mxu0 %v199
    %284 = vmatmul.bf16.gmra.mxu0 %v100
    %v285 = vpop.f32.mrf.mxu0
    %v286 = vadd.f32 0.0, %v285
    %v287 = vpop.f32.mrf.mxu0
    %v288 = vadd.f32 0.0, %v287
    %289 = vdwg.mxu0
    %290 = vmatpush.bf16.msra.mxu0 %v228
    %291 = vmatpush.bf16.msra.mxu0 %v224
    %292 = vmatpush.bf16.msra.mxu0 %v220
    %293 = vmatpush.bf16.msra.mxu0 %v216
    %294 = vmatpush.bf16.msra.mxu0 %v212
    %295 = vmatpush.bf16.msra.mxu0 %v208
    %296 = vmatpush.bf16.msra.mxu0 %v204
    %297 = vmatpush.bf16.msra.mxu0 %v200
    %298 = vmatmul.bf16.gmra.mxu0 %v100
    %v299 = vpop.f32.mrf.mxu0
    %v300 = vadd.f32 0.0, %v299
    %v301 = vpop.f32.mrf.mxu0
    %v302 = vadd.f32 0.0, %v301
    %303 = vdwg.mxu0
    %304 = vmatpush.bf16.msra.mxu0 %v229
    %305 = vmatpush.bf16.msra.mxu0 %v225
    %306 = vmatpush.bf16.msra.mxu0 %v221
    %307 = vmatpush.bf16.msra.mxu0 %v217
    %308 = vmatpush.bf16.msra.mxu0 %v213
    %309 = vmatpush.bf16.msra.mxu0 %v209
    %310 = vmatpush.bf16.msra.mxu0 %v205
    %311 = vmatpush.bf16.msra.mxu0 %v201
    %312 = vmatmul.bf16.gmra.mxu0 %v100
    %v313 = vpop.f32.mrf.mxu0
    %v314 = vadd.f32 0.0, %v313
    %v315 = vpop.f32.mrf.mxu0
    %v316 = vadd.f32 0.0, %v315
    %317 = vdwg.mxu0
    %v318 = vmax.f32 %v272, 0.0
    %v319 = vmax.f32 %v286, 0.0
    %v320 = vmax.f32 %v300, 0.0
    %v321 = vmax.f32 %v314, 0.0
    %v322 = vmax.f32 %v274, 0.0
    %v323 = vmax.f32 %v288, 0.0
    %v324 = vmax.f32 %v302, 0.0
    %v325 = vmax.f32 %v316, 0.0
    %v326 = vmul.f32 %v318, %v318
    %v327 = vmul.f32 %v319, %v319
    %v328 = vmul.f32 %v320, %v320
    %v329 = vmul.f32 %v321, %v321
    %v330 = vmul.f32 %v322, %v322
    %v331 = vmul.f32 %v323, %v323
    %v332 = vmul.f32 %v324, %v324
    %v333 = vmul.f32 %v325, %v325
    %v334 = vpack.c.bf16 %v330, %v326
    %v335 = vpack.c.bf16 %v331, %v327
    %v336 = vpack.c.bf16 %v332, %v328
    %v337 = vpack.c.bf16 %v333, %v329
    %v338 = vld [vmem:[#allocation7] sm:$0xf]
    %v339 = vld [vmem:[#allocation7 + $0x4] sm:$0xf]
    %v340 = vld [vmem:[#allocation7 + $0x8] sm:$0xf]
    %v341 = vld [vmem:[#allocation7 + $0xc] sm:$0xf]
    %v342 = vld [vmem:[#allocation7 + $0x10] sm:$0xf]
    %v343 = vld [vmem:[#allocation7 + $0x14] sm:$0xf]
    %v344 = vld [vmem:[#allocation7 + $0x18] sm:$0xf]
    %v345 = vld [vmem:[#allocation7 + $0x1c] sm:$0xf]
    %v346 = vld [vmem:[#allocation7 + $0x20] sm:$0xf]
    %v347 = vld [vmem:[#allocation7 + $0x24] sm:$0xf]
    %v348 = vld [vmem:[#allocation7 + $0x28] sm:$0xf]
    %v349 = vld [vmem:[#allocation7 + $0x2c] sm:$0xf]
    %v350 = vld [vmem:[#allocation7 + $0x30] sm:$0xf]
    %v351 = vld [vmem:[#allocation7 + $0x34] sm:$0xf]
    %v352 = vld [vmem:[#allocation7 + $0x38] sm:$0xf]
    %v353 = vld [vmem:[#allocation7 + $0x3c] sm:$0xf]
    %v354 = vld [vmem:[#allocation7 + $0x40] sm:$0xf]
    %v355 = vld [vmem:[#allocation7 + $0x44] sm:$0xf]
    %v356 = vld [vmem:[#allocation7 + $0x48] sm:$0xf]
    %v357 = vld [vmem:[#allocation7 + $0x4c] sm:$0xf]
    %v358 = vld [vmem:[#allocation7 + $0x50] sm:$0xf]
    %v359 = vld [vmem:[#allocation7 + $0x54] sm:$0xf]
    %v360 = vld [vmem:[#allocation7 + $0x58] sm:$0xf]
    %v361 = vld [vmem:[#allocation7 + $0x5c] sm:$0xf]
    %v362 = vld [vmem:[#allocation7 + $0x60] sm:$0xf]
    %v363 = vld [vmem:[#allocation7 + $0x64] sm:$0xf]
    %v364 = vld [vmem:[#allocation7 + $0x68] sm:$0xf]
    %v365 = vld [vmem:[#allocation7 + $0x6c] sm:$0xf]
    %v366 = vld [vmem:[#allocation7 + $0x70] sm:$0xf]
    %v367 = vld [vmem:[#allocation7 + $0x74] sm:$0xf]
    %v368 = vld [vmem:[#allocation7 + $0x78] sm:$0xf]
    %v369 = vld [vmem:[#allocation7 + $0x7c] sm:$0xf]
    %v370 = vld [vmem:[#allocation7 + $0x80] sm:$0xf]
    %v371 = vld [vmem:[#allocation7 + $0x84] sm:$0xf]
    %v372 = vld [vmem:[#allocation7 + $0x88] sm:$0xf]
    %v373 = vld [vmem:[#allocation7 + $0x8c] sm:$0xf]
    %v374 = vld [vmem:[#allocation7 + $0x90] sm:$0xf]
    %v375 = vld [vmem:[#allocation7 + $0x94] sm:$0xf]
    %v376 = vld [vmem:[#allocation7 + $0x98] sm:$0xf]
    %v377 = vld [vmem:[#allocation7 + $0x9c] sm:$0xf]
    %v378 = vld [vmem:[#allocation7 + $0xa0] sm:$0xf]
    %v379 = vld [vmem:[#allocation7 + $0xa4] sm:$0xf]
    %v380 = vld [vmem:[#allocation7 + $0xa8] sm:$0xf]
    %v381 = vld [vmem:[#allocation7 + $0xac] sm:$0xf]
    %v382 = vld [vmem:[#allocation7 + $0xb0] sm:$0xf]
    %v383 = vld [vmem:[#allocation7 + $0xb4] sm:$0xf]
    %v384 = vld [vmem:[#allocation7 + $0xb8] sm:$0xf]
    %v385 = vld [vmem:[#allocation7 + $0xbc] sm:$0xf]
    %v386 = vld [vmem:[#allocation7 + $0xc0] sm:$0xf]
    %v387 = vld [vmem:[#allocation7 + $0xc4] sm:$0xf]
    %v388 = vld [vmem:[#allocation7 + $0xc8] sm:$0xf]
    %v389 = vld [vmem:[#allocation7 + $0xcc] sm:$0xf]
    %v390 = vld [vmem:[#allocation7 + $0xd0] sm:$0xf]
    %v391 = vld [vmem:[#allocation7 + $0xd4] sm:$0xf]
    %v392 = vld [vmem:[#allocation7 + $0xd8] sm:$0xf]
    %v393 = vld [vmem:[#allocation7 + $0xdc] sm:$0xf]
    %v394 = vld [vmem:[#allocation7 + $0xe0] sm:$0xf]
    %v395 = vld [vmem:[#allocation7 + $0xe4] sm:$0xf]
    %v396 = vld [vmem:[#allocation7 + $0xe8] sm:$0xf]
    %v397 = vld [vmem:[#allocation7 + $0xec] sm:$0xf]
    %v398 = vld [vmem:[#allocation7 + $0xf0] sm:$0xf]
    %v399 = vld [vmem:[#allocation7 + $0xf4] sm:$0xf]
    %v400 = vld [vmem:[#allocation7 + $0xf8] sm:$0xf]
    %v401 = vld [vmem:[#allocation7 + $0xfc] sm:$0xf]
    %v466 = vunpack.c.l.b16 %v338
    %v467 = vunpack.c.l.b16 %v339
    %v468 = vunpack.c.l.b16 %v340
    %v469 = vunpack.c.l.b16 %v341
    %v470 = vunpack.c.l.b16 %v342
    %v471 = vunpack.c.l.b16 %v343
    %v472 = vunpack.c.l.b16 %v344
    %v473 = vunpack.c.l.b16 %v345
    %v474 = vunpack.c.l.b16 %v346
    %v475 = vunpack.c.l.b16 %v347
    %v476 = vunpack.c.l.b16 %v348
    %v477 = vunpack.c.l.b16 %v349
    %v478 = vunpack.c.l.b16 %v350
    %v479 = vunpack.c.l.b16 %v351
    %v480 = vunpack.c.l.b16 %v352
    %v481 = vunpack.c.l.b16 %v353
    %v482 = vunpack.c.l.b16 %v354
    %v483 = vunpack.c.l.b16 %v355
    %v484 = vunpack.c.l.b16 %v356
    %v485 = vunpack.c.l.b16 %v357
    %v486 = vunpack.c.l.b16 %v358
    %v487 = vunpack.c.l.b16 %v359
    %v488 = vunpack.c.l.b16 %v360
    %v489 = vunpack.c.l.b16 %v361
    %v490 = vunpack.c.l.b16 %v362
    %v491 = vunpack.c.l.b16 %v363
    %v492 = vunpack.c.l.b16 %v364
    %v493 = vunpack.c.l.b16 %v365
    %v494 = vunpack.c.l.b16 %v366
    %v495 = vunpack.c.l.b16 %v367
    %v496 = vunpack.c.l.b16 %v368
    %v497 = vunpack.c.l.b16 %v369
    %v498 = vunpack.c.l.b16 %v370
    %v499 = vunpack.c.l.b16 %v371
    %v500 = vunpack.c.l.b16 %v372
    %v501 = vunpack.c.l.b16 %v373
    %v502 = vunpack.c.l.b16 %v374
    %v503 = vunpack.c.l.b16 %v375
    %v504 = vunpack.c.l.b16 %v376
    %v505 = vunpack.c.l.b16 %v377
    %v506 = vunpack.c.l.b16 %v378
    %v507 = vunpack.c.l.b16 %v379
    %v508 = vunpack.c.l.b16 %v380
    %v509 = vunpack.c.l.b16 %v381
    %v510 = vunpack.c.l.b16 %v382
    %v511 = vunpack.c.l.b16 %v383
    %v512 = vunpack.c.l.b16 %v384
    %v513 = vunpack.c.l.b16 %v385
    %v514 = vunpack.c.l.b16 %v386
    %v515 = vunpack.c.l.b16 %v387
    %v516 = vunpack.c.l.b16 %v388
    %v517 = vunpack.c.l.b16 %v389
    %v518 = vunpack.c.l.b16 %v390
    %v519 = vunpack.c.l.b16 %v391
    %v520 = vunpack.c.l.b16 %v392
    %v521 = vunpack.c.l.b16 %v393
    %v522 = vunpack.c.l.b16 %v394
    %v523 = vunpack.c.l.b16 %v395
    %v524 = vunpack.c.l.b16 %v396
    %v525 = vunpack.c.l.b16 %v397
    %v526 = vunpack.c.l.b16 %v398
    %v527 = vunpack.c.l.b16 %v399
    %v528 = vunpack.c.l.b16 %v400
    %v529 = vunpack.c.l.b16 %v401
    %v530 = vpack.c.b16 %v467, %v466
    %v531 = vpack.c.b16 %v469, %v468
    %v532 = vpack.c.b16 %v471, %v470
    %v533 = vpack.c.b16 %v473, %v472
    %v534 = vpack.c.b16 %v475, %v474
    %v535 = vpack.c.b16 %v477, %v476
    %v536 = vpack.c.b16 %v479, %v478
    %v537 = vpack.c.b16 %v481, %v480
    %v538 = vpack.c.b16 %v483, %v482
    %v539 = vpack.c.b16 %v485, %v484
    %v540 = vpack.c.b16 %v487, %v486
    %v541 = vpack.c.b16 %v489, %v488
    %v542 = vpack.c.b16 %v491, %v490
    %v543 = vpack.c.b16 %v493, %v492
    %v544 = vpack.c.b16 %v495, %v494
    %v545 = vpack.c.b16 %v497, %v496
    %v546 = vpack.c.b16 %v499, %v498
    %v547 = vpack.c.b16 %v501, %v500
    %v548 = vpack.c.b16 %v503, %v502
    %v549 = vpack.c.b16 %v505, %v504
    %v550 = vpack.c.b16 %v507, %v506
    %v551 = vpack.c.b16 %v509, %v508
    %v552 = vpack.c.b16 %v511, %v510
    %v553 = vpack.c.b16 %v513, %v512
    %v554 = vpack.c.b16 %v515, %v514
    %v555 = vpack.c.b16 %v517, %v516
    %v556 = vpack.c.b16 %v519, %v518
    %v557 = vpack.c.b16 %v521, %v520
    %v558 = vpack.c.b16 %v523, %v522
    %v559 = vpack.c.b16 %v525, %v524
    %v560 = vpack.c.b16 %v527, %v526
    %v561 = vpack.c.b16 %v529, %v528
    %594 = vmatpush.bf16.msra.mxu0 %v537
    %595 = vmatpush.bf16.msra.mxu0 %v536
    %596 = vmatpush.bf16.msra.mxu0 %v535
    %597 = vmatpush.bf16.msra.mxu0 %v534
    %598 = vmatpush.bf16.msra.mxu0 %v533
    %599 = vmatpush.bf16.msra.mxu0 %v532
    %600 = vmatpush.bf16.msra.mxu0 %v531
    %601 = vmatpush.bf16.msra.mxu0 %v530
    %602 = vmatmul.bf16.gmra.mxu0 %v334
    %v603 = vpop.f32.mrf.mxu0
    %v604 = vadd.f32 0.0, %v603
    %v605 = vpop.f32.mrf.mxu0
    %v606 = vadd.f32 0.0, %v605
    %607 = vdwg.mxu0
    %608 = vmatpush.bf16.msra.mxu0 %v545
    %609 = vmatpush.bf16.msra.mxu0 %v544
    %610 = vmatpush.bf16.msra.mxu0 %v543
    %611 = vmatpush.bf16.msra.mxu0 %v542
    %612 = vmatpush.bf16.msra.mxu0 %v541
    %613 = vmatpush.bf16.msra.mxu0 %v540
    %614 = vmatpush.bf16.msra.mxu0 %v539
    %615 = vmatpush.bf16.msra.mxu0 %v538
    %616 = vmatmul.bf16.gmra.mxu0 %v335
    %v617 = vpop.f32.mrf.mxu0
    %v618 = vadd.f32 %v604, %v617
    %v619 = vpop.f32.mrf.mxu0
    %v620 = vadd.f32 %v606, %v619
    %621 = vdwg.mxu0
    %622 = vmatpush.bf16.msra.mxu0 %v553
    %623 = vmatpush.bf16.msra.mxu0 %v552
    %624 = vmatpush.bf16.msra.mxu0 %v551
    %625 = vmatpush.bf16.msra.mxu0 %v550
    %626 = vmatpush.bf16.msra.mxu0 %v549
    %627 = vmatpush.bf16.msra.mxu0 %v548
    %628 = vmatpush.bf16.msra.mxu0 %v547
    %629 = vmatpush.bf16.msra.mxu0 %v546
    %630 = vmatmul.bf16.gmra.mxu0 %v336
    %v631 = vpop.f32.mrf.mxu0
    %v632 = vadd.f32 %v618, %v631
    %v633 = vpop.f32.mrf.mxu0
    %v634 = vadd.f32 %v620, %v633
    %635 = vdwg.mxu0
    %636 = vmatpush.bf16.msra.mxu0 %v561
    %637 = vmatpush.bf16.msra.mxu0 %v560
    %638 = vmatpush.bf16.msra.mxu0 %v559
    %639 = vmatpush.bf16.msra.mxu0 %v558
    %640 = vmatpush.bf16.msra.mxu0 %v557
    %641 = vmatpush.bf16.msra.mxu0 %v556
    %642 = vmatpush.bf16.msra.mxu0 %v555
    %643 = vmatpush.bf16.msra.mxu0 %v554
    %644 = vmatmul.bf16.gmra.mxu0 %v337
    %v645 = vpop.f32.mrf.mxu0
    %v646 = vadd.f32 %v632, %v645
    %v647 = vpop.f32.mrf.mxu0
    %v648 = vadd.f32 %v634, %v647
    %649 = vdwg.mxu0
    %650 = vst [vmem:[#allocation8] sm:$0xff] %v646
    %651 = vst [vmem:[#allocation8 + $0x8] sm:$0xff] %v648
    // Predicated region
    $region26: #{tpu_custom_call.1} parent=1 // pred_check
      _
    $region27: #{tpu_custom_call.1} parent=1 // pred_check_branch
      %653 = sbr.rel (0) target = $region29
    $region28: #{tpu_custom_call.1} parent=1 // pred_region
      %655 = vsyncadd [#allocation4], 0
      %s656 = sshll.u32 [#allocation8], 4
      %s657 = int_to_ptr.vmem [resolvable:$true] %s656
      %s658 = sshll.u32 %s3, 4
      %s659 = int_to_ptr.hbm [resolvable:$true] %s658
      %664 = dma.vmem_to_hbm [thread:$0]  %s657, 256, %s659, [#allocation4], 128, 128, 8
    $region29: #{tpu_custom_call.1} parent=1 // pred_fallthru
      _
    // Predicated region
    $region30: #{tpu_custom_call.1} parent=1 // pred_check
      _
    $region31: #{tpu_custom_call.1} parent=1 // pred_check_branch
      %666 = sbr.rel (0) target = $region33
    $region32: #{tpu_custom_call.1} parent=1 // pred_region
      %668 = dma.done [#allocation4], 256
    $region33: #{tpu_custom_call.1} parent=1 // pred_fallthru
      _
    %669 = vsyncpa [#allocation3], 1
    %670 = vsyncpa [#allocation6], 1
    %671 = vsyncpa [#allocation4], 1

</llo_original>
